<compile_context>
chip_gen: v5e
topology: v5e:2x2
jax: 0.10.0
libtpu: 0.0.40
codegen_flags: <defaults>
</compile_context>

<pallas_src>
import functools
import math

import numpy as np
import jax
import jax.numpy as jnp
from jax.experimental import pallas as pl
from jax.experimental.pallas import tpu as pltpu


# ----------------------------------------------------------------------------
# Pallas kernel: whole TransformerLayer for Nb batch elements per grid step.
# ----------------------------------------------------------------------------
def _transformer_layer_kernel(x_ref, wqkv_ref, bqkv_ref, wo_ref, bo_ref, wff_ref,
                              o_ref, *, num_heads):
    # x_ref   : (L, Nb, c)  [or (L, c) when the batch dim is squeezed, Nb == 1]
    # wqkv_ref: (c, 3c)     fused (outer q/k/v Linear o MHA in_proj), transposed,
    #                       q columns pre-scaled by 1/sqrt(dh)
    # bqkv_ref: (1, 3c)     MHA in_proj bias (q third pre-scaled), f32
    # wo_ref  : (H, dh, c)  MHA out_proj weight, pre-split per head (W_out^T)
    # bo_ref  : (1, c)      MHA out_proj bias, f32
    # wff_ref : (c, c)      (fc2 @ fc1), transposed
    if len(x_ref.shape) == 3:
        L, Nb, c = x_ref.shape
    else:                                   # squeezed batch dim
        (L, c), Nb = x_ref.shape, 1
    H = num_heads
    dh = c // H
    T = L * Nb
    cdt = x_ref.dtype                       # MXU operand dtype (f32 or bf16)
    approx_recip = x_ref.dtype != jnp.float32

    # (L, Nb, c) -> (T, c): merges leading dims only, lane layout untouched.
    x2 = x_ref[...].reshape(T, c)

    # Fused q/k/v projection (outer Linears + 1/sqrt(dh) folded host-side),
    # f32 accumulation on the MXU.
    qkv = (jnp.dot(x2, wqkv_ref[...], preferred_element_type=jnp.float32)
           + bqkv_ref[...])                                          # (T, 3c) f32
    q = qkv[:, 0 * c:1 * c].astype(cdt)
    k = qkv[:, 1 * c:2 * c].astype(cdt)
    v = qkv[:, 2 * c:3 * c].astype(cdt)

    # Block-diagonal additive mask: rows are (l, n)-ordered, so tokens i, j
    # belong to the same batch element iff i % Nb == j % Nb.
    if Nb > 1:
        ri = jax.lax.broadcasted_iota(jnp.int32, (T, T), 0)
        ci = jax.lax.broadcasted_iota(jnp.int32, (T, T), 1)
        if (Nb & (Nb - 1)) == 0:            # power of two: cheap bitwise path
            same = (ri & (Nb - 1)) == (ci & (Nb - 1))
        else:
            same = (ri % Nb) == (ci % Nb)
        neg_mask = jnp.where(same, 0.0, -1e30).astype(jnp.float32)
    else:
        neg_mask = None

    # out_proj bias + first residual start the accumulator; each head's context
    # is projected with its own (dh, c) out_proj slice and accumulated directly
    # (no head concat).
    acc = x2.astype(jnp.float32) + bo_ref[...]                        # (T, c) f32
    for h in range(H):                       # static unroll, H is small
        lo = h * dh
        qh = q[:, lo:lo + dh]
        kh = k[:, lo:lo + dh]
        vh = v[:, lo:lo + dh]
        s = jnp.einsum('qd,kd->qk', qh, kh,
                       preferred_element_type=jnp.float32)            # (T, T) f32
        if neg_mask is not None:
            s = s + neg_mask
        s = s - jnp.max(s, axis=-1, keepdims=True)                    # stable
        p = jnp.exp(s)
        p = p * pl.reciprocal(jnp.sum(p, axis=-1, keepdims=True),
                              approx=approx_recip)
        ctx = jnp.dot(p.astype(cdt), vh,
                      preferred_element_type=jnp.float32)              # (T, dh)
        acc = acc + jnp.dot(ctx.astype(cdt), wo_ref[h],
                            preferred_element_type=jnp.float32)        # (T, c)

    # fc2(fc1(x)) folded host-side into one (c, c) weight; second residual.
    y = jnp.dot(acc.astype(cdt), wff_ref[...],
                preferred_element_type=jnp.float32) + acc
    o_ref[...] = y.reshape(o_ref.shape).astype(o_ref.dtype)


# ----------------------------------------------------------------------------
# Batch-block picker
# ----------------------------------------------------------------------------
def _pick_batch_block(N, L, min_rows=128, max_rows=256):
    """Batch elements per grid step.  Nb | N and Nb is 1, N, or a multiple of 8
    (keeps the (L, Nb, c) block's second-minor dim sublane aligned / full).
    Prefers Nb*L close to the 128-row MXU fill without letting the per-head
    (T, T) score tile blow up, then >= 2 grid steps (v7x dual TensorCore)."""
    cands = [nb for nb in range(1, N + 1)
             if N % nb == 0 and (nb == 1 or nb == N or nb % 8 == 0)]

    def score(nb):
        rows = nb * L
        return (rows <= max_rows, min(rows, min_rows), (N // nb) >= 2, rows)

    return max(cands, key=score)


# ----------------------------------------------------------------------------
# Wrapper
# ----------------------------------------------------------------------------
def transformer_layer_pallas(x, wq, wk, wv, w_in, b_in, w_out, b_out,
                             w_fc1, w_fc2, *, num_heads):
    # x: (L, N, c) -- PyTorch's (seq, batch, embed) layout (batch_first=False).
    L, N, c = x.shape
    H = num_heads
    assert c % H == 0
    dh = c // H
    f32 = jnp.float32

    # ---- exact host-side weight folding (linear o linear, nothing between) ----
    wq_in, wk_in, wv_in = jnp.split(w_in.astype(f32), 3, axis=0)       # (c, c)
    bq_in, bk_in, bv_in = jnp.split(b_in.astype(f32), 3)
    scale = 1.0 / math.sqrt(dh)
    w_q = (wq_in @ wq.astype(f32)) * scale        # 1/sqrt(dh) folded into q
    w_k = wk_in @ wk.astype(f32)
    w_v = wv_in @ wv.astype(f32)

    pdt = x.dtype                                  # MXU operand dtype
    wqkv_t = jnp.concatenate([w_q.T, w_k.T, w_v.T], axis=1).astype(pdt)  # (c, 3c)
    bqkv = jnp.concatenate([bq_in * scale, bk_in, bv_in]).reshape(1, 3 * c)  # f32
    wo_heads = w_out.astype(f32).T.reshape(H, dh, c).astype(pdt)          # (H,dh,c)
    bo = b_out.astype(f32).reshape(1, c)                                   # f32
    wff_t = (w_fc2.astype(f32) @ w_fc1.astype(f32)).T.astype(pdt)          # (c, c)

    Nb = _pick_batch_block(N, L)
    G = N // Nb
    T = L * Nb

    if Nb == 1:   # squeeze the batch dim so the block's last two dims stay (L, c)
        x_spec = pl.BlockSpec((L, None, c), lambda g: (0, g, 0))
        o_spec = pl.BlockSpec((L, None, c), lambda g: (0, g, 0))
    else:
        x_spec = pl.BlockSpec((L, Nb, c), lambda g: (0, g, 0))
        o_spec = pl.BlockSpec((L, Nb, c), lambda g: (0, g, 0))

    # VMEM budget (double-buffered activations + resident weights + f32 temps),
    # with generous headroom; stays well under v7x's 64 MiB for these shapes.
    itemsize = jnp.dtype(pdt).itemsize
    weight_bytes = (c * 3 * c + H * dh * c + c * c) * itemsize + (3 * c + c) * 4
    block_bytes = L * Nb * c * itemsize
    interm_bytes = (T * 3 * c + 2 * T * T + 2 * T * c) * 4
    vmem_limit = int(min(96 * 2 ** 20,
                         max(16 * 2 ** 20,
                             4 * (4 * block_bytes + 2 * weight_bytes
                                  + interm_bytes))))

    flops = (2 * N * L * c * 3 * c              # fused qkv projection
             + 2 * 2 * N * H * L * L * dh       # scores + probs @ v
             + 2 * N * L * c * c                # out projection
             + 2 * N * L * c * c)               # folded feed-forward
    bytes_accessed = 2 * N * L * c * itemsize + weight_bytes
    cost = pl.CostEstimate(flops=flops,
                           transcendentals=N * H * L * L,
                           bytes_accessed=bytes_accessed)

    kernel = functools.partial(_transformer_layer_kernel, num_heads=H)
    out = pl.pallas_call(
        kernel,
        out_shape=jax.ShapeDtypeStruct((L, N, c), x.dtype),
        grid_spec=pltpu.PrefetchScalarGridSpec(
            num_scalar_prefetch=0,
            grid=(G,),
            in_specs=[
                x_spec,                                            # x (batched)
                pl.BlockSpec((c, 3 * c), lambda g: (0, 0)),        # fused qkv W^T
                pl.BlockSpec((1, 3 * c), lambda g: (0, 0)),        # qkv bias
                pl.BlockSpec((H, dh, c), lambda g: (0, 0, 0)),     # out_proj W^T per head
                pl.BlockSpec((1, c), lambda g: (0, 0)),            # out_proj bias
                pl.BlockSpec((c, c), lambda g: (0, 0)),            # folded ff W^T
            ],
            out_specs=o_spec,
        ),
        compiler_params=pltpu.CompilerParams(
            dimension_semantics=("parallel",),
            vmem_limit_bytes=vmem_limit),
        cost_estimate=cost,
    )(x, wqkv_t, bqkv, wo_heads, bo, wff_t)

    return out                                        # already (L, N, c)


# ----------------------------------------------------------------------------
# Pure-JAX reference (mirrors the PyTorch module exactly, unfolded weights)
# ----------------------------------------------------------------------------
def transformer_layer_reference(x, wq, wk, wv, w_in, b_in, w_out, b_out,
                                w_fc1, w_fc2, *, num_heads):
    L, N, c = x.shape
    dh = c // num_heads

    q = x @ wq.T
    k = x @ wk.T
    v = x @ wv.T

    wq_in, wk_in, wv_in = jnp.split(w_in, 3, axis=0)
    bq_in, bk_in, bv_in = jnp.split(b_in, 3, axis=0)
    q = q @ wq_in.T + bq_in
    k = k @ wk_in.T + bk_in
    v = v @ wv_in.T + bv_in

    def split_heads(t):                  # (L, N, c) -> (N, H, L, dh)
        return t.reshape(L, N, num_heads, dh).transpose(1, 2, 0, 3)

    qh, kh, vh = split_heads(q), split_heads(k), split_heads(v)
    s = jnp.einsum('nhqd,nhkd->nhqk', qh, kh) / np.sqrt(dh)
    p = jax.nn.softmax(s, axis=-1)
    o = jnp.einsum('nhqk,nhkd->nhqd', p, vh)                 # (N, H, L, dh)
    o = o.transpose(2, 0, 1, 3).reshape(L, N, c)             # (L, N, c)

    attn = o @ w_out.T + b_out
    x1 = attn + x
    return (x1 @ w_fc1.T) @ w_fc2.T + x1


# ----------------------------------------------------------------------------
if __name__ == "__main__":
    key = jax.random.PRNGKey(0)
    L, N, c, num_heads = 8, 2, 32, 4     # seq=8, batch=2, hidden=32, 4 heads

    ks = jax.random.split(key, 10)
    std = 1.0 / np.sqrt(c)
    x = jax.random.normal(ks[0], (L, N, c), jnp.float32)
    # Parameter shapes match the PyTorch module:
    #   q/k/v:  Linear(c, c, bias=False)           -> (c, c)
    #   ma:     in_proj_weight (3c, c), in_proj_bias (3c,)
    #           out_proj.weight (c, c), out_proj.bias (c,)
    #   fc1/fc2: Linear(c, c, bias=False)          -> (c, c)
    wq = jax.random.normal(ks[1], (c, c), jnp.float32) * std
    wk = jax.random.normal(ks[2], (c, c), jnp.float32) * std
    wv = jax.random.normal(ks[3], (c, c), jnp.float32) * std
    w_in = jax.random.normal(ks[4], (3 * c, c), jnp.float32) * std
    b_in = jax.random.normal(ks[5], (3 * c,), jnp.float32) * 0.1
    w_out = jax.random.normal(ks[6], (c, c), jnp.float32) * std
    b_out = jax.random.normal(ks[7], (c,), jnp.float32) * 0.1
    w_fc1 = jax.random.normal(ks[8], (c, c), jnp.float32) * std
    w_fc2 = jax.random.normal(ks[9], (c, c), jnp.float32) * std

    args = (x, wq, wk, wv, w_in, b_in, w_out, b_out, w_fc1, w_fc2)

    # f32 path: strict check vs. unfolded pure-JAX reference.
    out = jax.block_until_ready(
        transformer_layer_pallas(*args, num_heads=num_heads))
    ref = transformer_layer_reference(*args, num_heads=num_heads)
    np.testing.assert_allclose(np.asarray(out), np.asarray(ref),
                               rtol=1e-4, atol=1e-4)

    # bf16 MXU path (v6e/v7x feedback): same kernel, bf16 operands, f32 accum.
    out_bf16 = jax.block_until_ready(
        transformer_layer_pallas(x.astype(jnp.bfloat16), *args[1:],
                                 num_heads=num_heads))
    np.testing.assert_allclose(np.asarray(out_bf16.astype(jnp.float32)),
                               np.asarray(ref), rtol=5e-2, atol=5e-2)

    print("KERNEL_OK")
</pallas_src>

<mosaic_0001>
module attributes {stable_mosaic.version = 11 : i64} {
  func.func @_transformer_layer_kernel(%arg0: i32, %arg1: memref<8x2x32xf32, #tpu.memory_space<vmem>>, %arg2: memref<32x96xf32, #tpu.memory_space<vmem>>, %arg3: memref<1x96xf32, #tpu.memory_space<vmem>>, %arg4: memref<4x8x32xf32, #tpu.memory_space<vmem>>, %arg5: memref<1x32xf32, #tpu.memory_space<vmem>>, %arg6: memref<32x32xf32, #tpu.memory_space<vmem>>, %arg7: memref<8x2x32xf32, #tpu.memory_space<vmem>>) attributes {dimension_semantics = [#tpu.dimension_semantics<parallel>], iteration_bounds = array<i64: 1>, scalar_prefetch = 0 : i64, scratch_operands = 0 : i64, tpu.core_type = #tpu.core_type<tc>, window_params = [{transform_indices = @transform_0, window_bounds = array<i64: 8, 2, 32>}, {pipeline_mode = #tpu.pipeline_mode<synchronous>, transform_indices = @transform_1, window_bounds = array<i64: 32, 96>}, {pipeline_mode = #tpu.pipeline_mode<synchronous>, transform_indices = @transform_2, window_bounds = array<i64: 1, 96>}, {pipeline_mode = #tpu.pipeline_mode<synchronous>, transform_indices = @transform_3, window_bounds = array<i64: 4, 8, 32>}, {pipeline_mode = #tpu.pipeline_mode<synchronous>, transform_indices = @transform_4, window_bounds = array<i64: 1, 32>}, {pipeline_mode = #tpu.pipeline_mode<synchronous>, transform_indices = @transform_5, window_bounds = array<i64: 32, 32>}, {transform_indices = @transform_6, window_bounds = array<i64: 8, 2, 32>}]} {
    %c0 = arith.constant 0 : index
    %c0_0 = arith.constant 0 : index
    %c0_1 = arith.constant 0 : index
    %0 = vector.load %arg1[%c0, %c0_0, %c0_1] : memref<8x2x32xf32, #tpu.memory_space<vmem>>, vector<8x2x32xf32>
    %1 = vector.shape_cast %0 : vector<8x2x32xf32> to vector<16x32xf32>
    %c0_2 = arith.constant 0 : index
    %c0_3 = arith.constant 0 : index
    %2 = vector.load %arg2[%c0_2, %c0_3] : memref<32x96xf32, #tpu.memory_space<vmem>>, vector<32x96xf32>
    %cst = arith.constant dense<0.000000e+00> : vector<16x96xf32>
    %3 = tpu.matmul %1, %2, %cst {dimension_numbers = #tpu.dot_dimension_numbers<[1], [0], [0], [1], [0, 0, 1, 1], [], []>} : vector<16x32xf32>, vector<32x96xf32>, vector<16x96xf32> -> vector<16x96xf32>
    %c0_4 = arith.constant 0 : index
    %c0_5 = arith.constant 0 : index
    %4 = vector.load %arg3[%c0_4, %c0_5] : memref<1x96xf32, #tpu.memory_space<vmem>>, vector<1x96xf32>
    %5 = vector.broadcast %4 : vector<1x96xf32> to vector<16x96xf32>
    %6 = arith.addf %3, %5 : vector<16x96xf32>
    %7 = vector.extract_strided_slice %6 {offsets = [0, 0], sizes = [16, 32], strides = [1, 1]} : vector<16x96xf32> to vector<16x32xf32>
    %8 = vector.extract_strided_slice %6 {offsets = [0, 32], sizes = [16, 32], strides = [1, 1]} : vector<16x96xf32> to vector<16x32xf32>
    %9 = vector.extract_strided_slice %6 {offsets = [0, 64], sizes = [16, 32], strides = [1, 1]} : vector<16x96xf32> to vector<16x32xf32>
    %10 = tpu.iota {dimensions = array<i32: 0>} : vector<16x16xi32>
    %11 = tpu.iota {dimensions = array<i32: 1>} : vector<16x16xi32>
    %c1_i32 = arith.constant 1 : i32
    %12 = vector.broadcast %c1_i32 : i32 to vector<16x16xi32>
    %13 = arith.andi %10, %12 : vector<16x16xi32>
    %c1_i32_6 = arith.constant 1 : i32
    %14 = vector.broadcast %c1_i32_6 : i32 to vector<16x16xi32>
    %15 = arith.andi %11, %14 : vector<16x16xi32>
    %16 = arith.cmpi eq, %13, %15 : vector<16x16xi32>
    %cst_7 = arith.constant 0.000000e+00 : f32
    %cst_8 = arith.constant -1.000000e+30 : f32
    %17 = vector.broadcast %cst_7 : f32 to vector<16x16xf32>
    %18 = vector.broadcast %cst_8 : f32 to vector<16x16xf32>
    %19 = arith.select %16, %17, %18 : vector<16x16xi1>, vector<16x16xf32>
    %c0_9 = arith.constant 0 : index
    %c0_10 = arith.constant 0 : index
    %20 = vector.load %arg5[%c0_9, %c0_10] : memref<1x32xf32, #tpu.memory_space<vmem>>, vector<1x32xf32>
    %21 = vector.broadcast %20 : vector<1x32xf32> to vector<16x32xf32>
    %22 = arith.addf %1, %21 : vector<16x32xf32>
    %23 = vector.extract_strided_slice %7 {offsets = [0, 0], sizes = [16, 8], strides = [1, 1]} : vector<16x32xf32> to vector<16x8xf32>
    %24 = vector.extract_strided_slice %8 {offsets = [0, 0], sizes = [16, 8], strides = [1, 1]} : vector<16x32xf32> to vector<16x8xf32>
    %25 = vector.extract_strided_slice %9 {offsets = [0, 0], sizes = [16, 8], strides = [1, 1]} : vector<16x32xf32> to vector<16x8xf32>
    "tpu.trace_start"() <{level = 10 : i32, message = "qd,kd->qk"}> : () -> ()
    %cst_11 = arith.constant dense<0.000000e+00> : vector<16x16xf32>
    %26 = tpu.matmul %23, %24, %cst_11 {dimension_numbers = #tpu.dot_dimension_numbers<[1], [1], [0], [0], [0, 0, 1, 0], [], []>} : vector<16x8xf32>, vector<16x8xf32>, vector<16x16xf32> -> vector<16x16xf32>
    "tpu.trace_stop"() : () -> ()
    %27 = arith.addf %26, %19 : vector<16x16xf32>
    %cst_12 = arith.constant dense<0xFF800000> : vector<16xf32>
    %28 = vector.multi_reduction <maximumf>, %27, %cst_12 [1] : vector<16x16xf32> to vector<16xf32>
    %29 = vector.shape_cast %28 : vector<16xf32> to vector<16x1xf32>
    %30 = vector.broadcast %29 : vector<16x1xf32> to vector<16x16xf32>
    %31 = arith.subf %27, %30 : vector<16x16xf32>
    %32 = math.exp %31 : vector<16x16xf32>
    %cst_13 = arith.constant dense<0.000000e+00> : vector<16xf32>
    %33 = vector.multi_reduction <add>, %32, %cst_13 [1] : vector<16x16xf32> to vector<16xf32>
    %34 = vector.shape_cast %33 : vector<16xf32> to vector<16x1xf32>
    %35 = tpu.reciprocal %34 : vector<16x1xf32> -> vector<16x1xf32>
    %36 = vector.broadcast %35 : vector<16x1xf32> to vector<16x16xf32>
    %37 = arith.mulf %32, %36 : vector<16x16xf32>
    %cst_14 = arith.constant dense<0.000000e+00> : vector<16x8xf32>
    %38 = tpu.matmul %37, %25, %cst_14 {dimension_numbers = #tpu.dot_dimension_numbers<[1], [0], [0], [1], [0, 0, 1, 1], [], []>} : vector<16x16xf32>, vector<16x8xf32>, vector<16x8xf32> -> vector<16x8xf32>
    %c0_15 = arith.constant 0 : index
    %c0_16 = arith.constant 0 : index
    %c0_17 = arith.constant 0 : index
    %39 = vector.load %arg4[%c0_15, %c0_16, %c0_17] : memref<4x8x32xf32, #tpu.memory_space<vmem>>, vector<1x8x32xf32>
    %40 = vector.shape_cast %39 : vector<1x8x32xf32> to vector<8x32xf32>
    %cst_18 = arith.constant dense<0.000000e+00> : vector<16x32xf32>
    %41 = tpu.matmul %38, %40, %cst_18 {dimension_numbers = #tpu.dot_dimension_numbers<[1], [0], [0], [1], [0, 0, 1, 1], [], []>} : vector<16x8xf32>, vector<8x32xf32>, vector<16x32xf32> -> vector<16x32xf32>
    %42 = arith.addf %22, %41 : vector<16x32xf32>
    %43 = vector.extract_strided_slice %7 {offsets = [0, 8], sizes = [16, 8], strides = [1, 1]} : vector<16x32xf32> to vector<16x8xf32>
    %44 = vector.extract_strided_slice %8 {offsets = [0, 8], sizes = [16, 8], strides = [1, 1]} : vector<16x32xf32> to vector<16x8xf32>
    %45 = vector.extract_strided_slice %9 {offsets = [0, 8], sizes = [16, 8], strides = [1, 1]} : vector<16x32xf32> to vector<16x8xf32>
    "tpu.trace_start"() <{level = 10 : i32, message = "qd,kd->qk"}> : () -> ()
    %cst_19 = arith.constant dense<0.000000e+00> : vector<16x16xf32>
    %46 = tpu.matmul %43, %44, %cst_19 {dimension_numbers = #tpu.dot_dimension_numbers<[1], [1], [0], [0], [0, 0, 1, 0], [], []>} : vector<16x8xf32>, vector<16x8xf32>, vector<16x16xf32> -> vector<16x16xf32>
    "tpu.trace_stop"() : () -> ()
    %47 = arith.addf %46, %19 : vector<16x16xf32>
    %cst_20 = arith.constant dense<0xFF800000> : vector<16xf32>
    %48 = vector.multi_reduction <maximumf>, %47, %cst_20 [1] : vector<16x16xf32> to vector<16xf32>
    %49 = vector.shape_cast %48 : vector<16xf32> to vector<16x1xf32>
    %50 = vector.broadcast %49 : vector<16x1xf32> to vector<16x16xf32>
    %51 = arith.subf %47, %50 : vector<16x16xf32>
    %52 = math.exp %51 : vector<16x16xf32>
    %cst_21 = arith.constant dense<0.000000e+00> : vector<16xf32>
    %53 = vector.multi_reduction <add>, %52, %cst_21 [1] : vector<16x16xf32> to vector<16xf32>
    %54 = vector.shape_cast %53 : vector<16xf32> to vector<16x1xf32>
    %55 = tpu.reciprocal %54 : vector<16x1xf32> -> vector<16x1xf32>
    %56 = vector.broadcast %55 : vector<16x1xf32> to vector<16x16xf32>
    %57 = arith.mulf %52, %56 : vector<16x16xf32>
    %cst_22 = arith.constant dense<0.000000e+00> : vector<16x8xf32>
    %58 = tpu.matmul %57, %45, %cst_22 {dimension_numbers = #tpu.dot_dimension_numbers<[1], [0], [0], [1], [0, 0, 1, 1], [], []>} : vector<16x16xf32>, vector<16x8xf32>, vector<16x8xf32> -> vector<16x8xf32>
    %c1 = arith.constant 1 : index
    %c0_23 = arith.constant 0 : index
    %c0_24 = arith.constant 0 : index
    %59 = vector.load %arg4[%c1, %c0_23, %c0_24] : memref<4x8x32xf32, #tpu.memory_space<vmem>>, vector<1x8x32xf32>
    %60 = vector.shape_cast %59 : vector<1x8x32xf32> to vector<8x32xf32>
    %cst_25 = arith.constant dense<0.000000e+00> : vector<16x32xf32>
    %61 = tpu.matmul %58, %60, %cst_25 {dimension_numbers = #tpu.dot_dimension_numbers<[1], [0], [0], [1], [0, 0, 1, 1], [], []>} : vector<16x8xf32>, vector<8x32xf32>, vector<16x32xf32> -> vector<16x32xf32>
    %62 = arith.addf %42, %61 : vector<16x32xf32>
    %63 = vector.extract_strided_slice %7 {offsets = [0, 16], sizes = [16, 8], strides = [1, 1]} : vector<16x32xf32> to vector<16x8xf32>
    %64 = vector.extract_strided_slice %8 {offsets = [0, 16], sizes = [16, 8], strides = [1, 1]} : vector<16x32xf32> to vector<16x8xf32>
    %65 = vector.extract_strided_slice %9 {offsets = [0, 16], sizes = [16, 8], strides = [1, 1]} : vector<16x32xf32> to vector<16x8xf32>
    "tpu.trace_start"() <{level = 10 : i32, message = "qd,kd->qk"}> : () -> ()
    %cst_26 = arith.constant dense<0.000000e+00> : vector<16x16xf32>
    %66 = tpu.matmul %63, %64, %cst_26 {dimension_numbers = #tpu.dot_dimension_numbers<[1], [1], [0], [0], [0, 0, 1, 0], [], []>} : vector<16x8xf32>, vector<16x8xf32>, vector<16x16xf32> -> vector<16x16xf32>
    "tpu.trace_stop"() : () -> ()
    %67 = arith.addf %66, %19 : vector<16x16xf32>
    %cst_27 = arith.constant dense<0xFF800000> : vector<16xf32>
    %68 = vector.multi_reduction <maximumf>, %67, %cst_27 [1] : vector<16x16xf32> to vector<16xf32>
    %69 = vector.shape_cast %68 : vector<16xf32> to vector<16x1xf32>
    %70 = vector.broadcast %69 : vector<16x1xf32> to vector<16x16xf32>
    %71 = arith.subf %67, %70 : vector<16x16xf32>
    %72 = math.exp %71 : vector<16x16xf32>
    %cst_28 = arith.constant dense<0.000000e+00> : vector<16xf32>
    %73 = vector.multi_reduction <add>, %72, %cst_28 [1] : vector<16x16xf32> to vector<16xf32>
    %74 = vector.shape_cast %73 : vector<16xf32> to vector<16x1xf32>
    %75 = tpu.reciprocal %74 : vector<16x1xf32> -> vector<16x1xf32>
    %76 = vector.broadcast %75 : vector<16x1xf32> to vector<16x16xf32>
    %77 = arith.mulf %72, %76 : vector<16x16xf32>
    %cst_29 = arith.constant dense<0.000000e+00> : vector<16x8xf32>
    %78 = tpu.matmul %77, %65, %cst_29 {dimension_numbers = #tpu.dot_dimension_numbers<[1], [0], [0], [1], [0, 0, 1, 1], [], []>} : vector<16x16xf32>, vector<16x8xf32>, vector<16x8xf32> -> vector<16x8xf32>
    %c2 = arith.constant 2 : index
    %c0_30 = arith.constant 0 : index
    %c0_31 = arith.constant 0 : index
    %79 = vector.load %arg4[%c2, %c0_30, %c0_31] : memref<4x8x32xf32, #tpu.memory_space<vmem>>, vector<1x8x32xf32>
    %80 = vector.shape_cast %79 : vector<1x8x32xf32> to vector<8x32xf32>
    %cst_32 = arith.constant dense<0.000000e+00> : vector<16x32xf32>
    %81 = tpu.matmul %78, %80, %cst_32 {dimension_numbers = #tpu.dot_dimension_numbers<[1], [0], [0], [1], [0, 0, 1, 1], [], []>} : vector<16x8xf32>, vector<8x32xf32>, vector<16x32xf32> -> vector<16x32xf32>
    %82 = arith.addf %62, %81 : vector<16x32xf32>
    %83 = vector.extract_strided_slice %7 {offsets = [0, 24], sizes = [16, 8], strides = [1, 1]} : vector<16x32xf32> to vector<16x8xf32>
    %84 = vector.extract_strided_slice %8 {offsets = [0, 24], sizes = [16, 8], strides = [1, 1]} : vector<16x32xf32> to vector<16x8xf32>
    %85 = vector.extract_strided_slice %9 {offsets = [0, 24], sizes = [16, 8], strides = [1, 1]} : vector<16x32xf32> to vector<16x8xf32>
    "tpu.trace_start"() <{level = 10 : i32, message = "qd,kd->qk"}> : () -> ()
    %cst_33 = arith.constant dense<0.000000e+00> : vector<16x16xf32>
    %86 = tpu.matmul %83, %84, %cst_33 {dimension_numbers = #tpu.dot_dimension_numbers<[1], [1], [0], [0], [0, 0, 1, 0], [], []>} : vector<16x8xf32>, vector<16x8xf32>, vector<16x16xf32> -> vector<16x16xf32>
    "tpu.trace_stop"() : () -> ()
    %87 = arith.addf %86, %19 : vector<16x16xf32>
    %cst_34 = arith.constant dense<0xFF800000> : vector<16xf32>
    %88 = vector.multi_reduction <maximumf>, %87, %cst_34 [1] : vector<16x16xf32> to vector<16xf32>
    %89 = vector.shape_cast %88 : vector<16xf32> to vector<16x1xf32>
    %90 = vector.broadcast %89 : vector<16x1xf32> to vector<16x16xf32>
    %91 = arith.subf %87, %90 : vector<16x16xf32>
    %92 = math.exp %91 : vector<16x16xf32>
    %cst_35 = arith.constant dense<0.000000e+00> : vector<16xf32>
    %93 = vector.multi_reduction <add>, %92, %cst_35 [1] : vector<16x16xf32> to vector<16xf32>
    %94 = vector.shape_cast %93 : vector<16xf32> to vector<16x1xf32>
    %95 = tpu.reciprocal %94 : vector<16x1xf32> -> vector<16x1xf32>
    %96 = vector.broadcast %95 : vector<16x1xf32> to vector<16x16xf32>
    %97 = arith.mulf %92, %96 : vector<16x16xf32>
    %cst_36 = arith.constant dense<0.000000e+00> : vector<16x8xf32>
    %98 = tpu.matmul %97, %85, %cst_36 {dimension_numbers = #tpu.dot_dimension_numbers<[1], [0], [0], [1], [0, 0, 1, 1], [], []>} : vector<16x16xf32>, vector<16x8xf32>, vector<16x8xf32> -> vector<16x8xf32>
    %c3 = arith.constant 3 : index
    %c0_37 = arith.constant 0 : index
    %c0_38 = arith.constant 0 : index
    %99 = vector.load %arg4[%c3, %c0_37, %c0_38] : memref<4x8x32xf32, #tpu.memory_space<vmem>>, vector<1x8x32xf32>
    %100 = vector.shape_cast %99 : vector<1x8x32xf32> to vector<8x32xf32>
    %cst_39 = arith.constant dense<0.000000e+00> : vector<16x32xf32>
    %101 = tpu.matmul %98, %100, %cst_39 {dimension_numbers = #tpu.dot_dimension_numbers<[1], [0], [0], [1], [0, 0, 1, 1], [], []>} : vector<16x8xf32>, vector<8x32xf32>, vector<16x32xf32> -> vector<16x32xf32>
    %102 = arith.addf %82, %101 : vector<16x32xf32>
    %c0_40 = arith.constant 0 : index
    %c0_41 = arith.constant 0 : index
    %103 = vector.load %arg6[%c0_40, %c0_41] : memref<32x32xf32, #tpu.memory_space<vmem>>, vector<32x32xf32>
    %cst_42 = arith.constant dense<0.000000e+00> : vector<16x32xf32>
    %104 = tpu.matmul %102, %103, %cst_42 {dimension_numbers = #tpu.dot_dimension_numbers<[1], [0], [0], [1], [0, 0, 1, 1], [], []>} : vector<16x32xf32>, vector<32x32xf32>, vector<16x32xf32> -> vector<16x32xf32>
    %105 = arith.addf %104, %102 : vector<16x32xf32>
    %106 = vector.shape_cast %105 : vector<16x32xf32> to vector<8x2x32xf32>
    %c0_43 = arith.constant 0 : index
    %c0_44 = arith.constant 0 : index
    %c0_45 = arith.constant 0 : index
    %107 = vector.load %arg7[%c0_43, %c0_44, %c0_45] : memref<8x2x32xf32, #tpu.memory_space<vmem>>, vector<8x2x32xf32>
    tpu.vector_store %arg7[%c0_43, %c0_44, %c0_45], %106 {strides = array<i32>} : memref<8x2x32xf32, #tpu.memory_space<vmem>>, vector<8x2x32xf32>,
    return
  }
  func.func @transform_0(%arg0: i32) -> (i32, i32, i32) {
    %c0_i32 = arith.constant 0 : i32
    %c0_i32_0 = arith.constant 0 : i32
    %c0_i32_1 = arith.constant 0 : i32
    return %c0_i32, %arg0, %c0_i32_0 : i32, i32, i32
  }
  func.func @transform_1(%arg0: i32) -> (i32, i32) {
    %c0_i32 = arith.constant 0 : i32
    %c0_i32_0 = arith.constant 0 : i32
    %c0_i32_1 = arith.constant 0 : i32
    return %c0_i32, %c0_i32_0 : i32, i32
  }
  func.func @transform_2(%arg0: i32) -> (i32, i32) {
    %c0_i32 = arith.constant 0 : i32
    %c0_i32_0 = arith.constant 0 : i32
    %c0_i32_1 = arith.constant 0 : i32
    return %c0_i32, %c0_i32_0 : i32, i32
  }
  func.func @transform_3(%arg0: i32) -> (i32, i32, i32) {
    %c0_i32 = arith.constant 0 : i32
    %c0_i32_0 = arith.constant 0 : i32
    %c0_i32_1 = arith.constant 0 : i32
    %c0_i32_2 = arith.constant 0 : i32
    return %c0_i32, %c0_i32_0, %c0_i32_1 : i32, i32, i32
  }
  func.func @transform_4(%arg0: i32) -> (i32, i32) {
    %c0_i32 = arith.constant 0 : i32
    %c0_i32_0 = arith.constant 0 : i32
    %c0_i32_1 = arith.constant 0 : i32
    return %c0_i32, %c0_i32_0 : i32, i32
  }
  func.func @transform_5(%arg0: i32) -> (i32, i32) {
    %c0_i32 = arith.constant 0 : i32
    %c0_i32_0 = arith.constant 0 : i32
    %c0_i32_1 = arith.constant 0 : i32
    return %c0_i32, %c0_i32_0 : i32, i32
  }
  func.func @transform_6(%arg0: i32) -> (i32, i32, i32) {
    %c0_i32 = arith.constant 0 : i32
    %c0_i32_0 = arith.constant 0 : i32
    %c0_i32_1 = arith.constant 0 : i32
    return %c0_i32, %arg0, %c0_i32_0 : i32, i32, i32
  }
}

</mosaic_0001>

<llo_original>
// kernel: tpu_custom_call.1
$region0: #{tpu_custom_call.1}
  #allocation0 [shape = 'u32[]', space=smem, size = 0x4, offset = 0x4, fixed_abs, tag = 'smem constant byte address 0x4 - core index']
  #allocation1 [shape = 'u32[72,128]{1,0:T(1,128)}', space=vmem, size = 0x9000, scoped, tag = 'internal scratch']
  %s0 = inlined_call_operand.hbm [shape: f32[8,2,32], index: 0, kind: input, shape index: {}]
  %s1 = inlined_call_operand.hbm [shape: f32[32,96], index: 1, kind: input, shape index: {}]
  %s2 = inlined_call_operand.vmem [shape: f32[1,96], index: 2, kind: input, shape index: {}]
  %s3 = inlined_call_operand.hbm [shape: f32[4,8,32], index: 3, kind: input, shape index: {}]
  %s4 = inlined_call_operand.vmem [shape: f32[1,32], index: 4, kind: input, shape index: {}]
  %s5 = inlined_call_operand.hbm [shape: f32[32,32], index: 5, kind: input, shape index: {}]
  %s6 = inlined_call_operand.hbm [shape: f32[8,2,32], index: 6, kind: output, shape index: {}]
  %s7 = sld [smem:[#allocation0]]
  $region50: #{tpu_custom_call.1} parent=0
    _
  %s9 = ssub.s32 1, %s7
  %s10 = scalar_select 0, %s9, %s7
  $region1: #{tpu_custom_call.1} parent=0
    #allocation2 [shape = 'u8[8192]{0}', space=vmem, size = 0x2000, scoped, tag = 'input window, operand 0, single buffered']
    #allocation3 [shape = 's32[1]{0}', space=sflag, size = 0x4, scoped, tag = 'scoped memory for tpu_custom_call.1']
    #allocation4 [shape = 's32[1]{0}', space=sflag, size = 0x4, scoped, tag = 'scoped memory for tpu_custom_call.1']
    #allocation5 [shape = 'u8[16384]{0}', space=vmem, size = 0x4000, scoped, tag = 'input window, operand 1, single buffered']
    #allocation6 [shape = 's32[1]{0}', space=sflag, size = 0x4, scoped, tag = 'scoped memory for tpu_custom_call.1']
    #allocation7 [shape = 'u8[16384]{0}', space=vmem, size = 0x4000, scoped, tag = 'input window, operand 3, single buffered']
    #allocation8 [shape = 'u8[16384]{0}', space=vmem, size = 0x4000, scoped, tag = 'input window, operand 5, single buffered']
    #allocation9 [shape = 's32[1]{0}', space=sflag, size = 0x4, scoped, tag = 'scoped memory for tpu_custom_call.1']
    #allocation10 [shape = 'u8[8192]{0}', space=vmem, size = 0x2000, scoped, tag = 'output window, operand 0, single buffered']
    %11 = vsyncpa [#allocation3], 0
    %12 = vsyncpa [#allocation6], 0
    %13 = vsyncpa [#allocation9], 0
    %14 = vsyncpa [#allocation4], 0
    // Predicated region
    $region2: #{tpu_custom_call.1} parent=1 // pred_check
      _
    $region3: #{tpu_custom_call.1} parent=1 // pred_check_branch
      %16 = sbr.rel (0) target = $region5
    $region4: #{tpu_custom_call.1} parent=1 // pred_region
      %18 = vsyncadd [#allocation3], 0
      %s19 = sshll.u32 %s0, 4
      %s20 = int_to_ptr.hbm [resolvable:$true] %s19
      %s21 = sshll.u32 [#allocation2], 4
      %s22 = int_to_ptr.vmem [resolvable:$true] %s21
      %27 = dma.hbm_to_vmem [thread:$0]  %s20, 256, %s22, [#allocation3], 32, 32, 2
    $region5: #{tpu_custom_call.1} parent=1 // pred_fallthru
      _
    // Predicated region
    $region6: #{tpu_custom_call.1} parent=1 // pred_check
      _
    $region7: #{tpu_custom_call.1} parent=1 // pred_check_branch
      %29 = sbr.rel (0) target = $region9
    $region8: #{tpu_custom_call.1} parent=1 // pred_region
      %31 = vsyncadd [#allocation6], 0
      %s32 = sshll.u32 %s1, 4
      %s33 = int_to_ptr.hbm [resolvable:$true] %s32
      %s34 = sshll.u32 [#allocation5], 4
      %s35 = int_to_ptr.vmem [resolvable:$true] %s34
      %40 = dma.hbm_to_vmem [thread:$0]  %s33, 512, %s35, [#allocation6], 128, 128, 8
    $region9: #{tpu_custom_call.1} parent=1 // pred_fallthru
      _
    // Predicated region
    $region10: #{tpu_custom_call.1} parent=1 // pred_check
      _
    $region11: #{tpu_custom_call.1} parent=1 // pred_check_branch
      %42 = sbr.rel (0) target = $region13
    $region12: #{tpu_custom_call.1} parent=1 // pred_region
      _
    $region13: #{tpu_custom_call.1} parent=1 // pred_fallthru
      _
    // Predicated region
    $region14: #{tpu_custom_call.1} parent=1 // pred_check
      _
    $region15: #{tpu_custom_call.1} parent=1 // pred_check_branch
      %44 = sbr.rel (0) target = $region17
    $region16: #{tpu_custom_call.1} parent=1 // pred_region
      %46 = vsyncadd [#allocation6], 0
      %s47 = sshll.u32 %s3, 4
      %s48 = int_to_ptr.hbm [resolvable:$true] %s47
      %s49 = sshll.u32 [#allocation7], 4
      %s50 = int_to_ptr.vmem [resolvable:$true] %s49
      %55 = dma.hbm_to_vmem [thread:$0]  %s48, 512, %s50, [#allocation6], 128, 128, 8
    $region17: #{tpu_custom_call.1} parent=1 // pred_fallthru
      _
    // Predicated region
    $region18: #{tpu_custom_call.1} parent=1 // pred_check
      _
    $region19: #{tpu_custom_call.1} parent=1 // pred_check_branch
      %57 = sbr.rel (0) target = $region21
    $region20: #{tpu_custom_call.1} parent=1 // pred_region
      _
    $region21: #{tpu_custom_call.1} parent=1 // pred_fallthru
      _
    // Predicated region
    $region22: #{tpu_custom_call.1} parent=1 // pred_check
      _
    $region23: #{tpu_custom_call.1} parent=1 // pred_check_branch
      %59 = sbr.rel (0) target = $region25
    $region24: #{tpu_custom_call.1} parent=1 // pred_region
      %61 = vsyncadd [#allocation9], 0
      %s62 = sshll.u32 %s5, 4
      %s63 = int_to_ptr.hbm [resolvable:$true] %s62
      %s64 = sshll.u32 [#allocation8], 4
      %s65 = int_to_ptr.vmem [resolvable:$true] %s64
      %70 = dma.hbm_to_vmem [thread:$0]  %s63, 512, %s65, [#allocation9], 128, 128, 8
    $region25: #{tpu_custom_call.1} parent=1 // pred_fallthru
      _
    // Predicated region
    $region26: #{tpu_custom_call.1} parent=1 // pred_check
      _
    $region27: #{tpu_custom_call.1} parent=1 // pred_check_branch
      %72 = sbr.rel (0) target = $region29
    $region28: #{tpu_custom_call.1} parent=1 // pred_region
      %74 = dma.done [#allocation3], 256
    $region29: #{tpu_custom_call.1} parent=1 // pred_fallthru
      _
    // Predicated region
    $region30: #{tpu_custom_call.1} parent=1 // pred_check
      _
    $region31: #{tpu_custom_call.1} parent=1 // pred_check_branch
      %76 = sbr.rel (0) target = $region33
    $region32: #{tpu_custom_call.1} parent=1 // pred_region
      %78 = dma.done [#allocation6], 512
    $region33: #{tpu_custom_call.1} parent=1 // pred_fallthru
      _
    // Predicated region
    $region34: #{tpu_custom_call.1} parent=1 // pred_check
      _
    $region35: #{tpu_custom_call.1} parent=1 // pred_check_branch
      %80 = sbr.rel (0) target = $region37
    $region36: #{tpu_custom_call.1} parent=1 // pred_region
      %82 = dma.done [#allocation6], 512
    $region37: #{tpu_custom_call.1} parent=1 // pred_fallthru
      _
    // Predicated region
    $region38: #{tpu_custom_call.1} parent=1 // pred_check
      _
    $region39: #{tpu_custom_call.1} parent=1 // pred_check_branch
      %84 = sbr.rel (0) target = $region41
    $region40: #{tpu_custom_call.1} parent=1 // pred_region
      %86 = dma.done [#allocation9], 512
    $region41: #{tpu_custom_call.1} parent=1 // pred_fallthru
      _
    %v87 = vld [vmem:[#allocation2] sm:$0x3]
    %v88 = vld [vmem:[#allocation2 + $0x2] sm:$0x3]
    %v89 = vld [vmem:[#allocation2 + $0x4] sm:$0x3]
    %v90 = vld [vmem:[#allocation2 + $0x6] sm:$0x3]
    %v91 = vld [vmem:[#allocation2 + $0x8] sm:$0x3]
    %v92 = vld [vmem:[#allocation2 + $0xa] sm:$0x3]
    %v93 = vld [vmem:[#allocation2 + $0xc] sm:$0x3]
    %v94 = vld [vmem:[#allocation2 + $0xe] sm:$0x3]
    %v95 = vld [vmem:[#allocation5] sm:$0xff]
    %v96 = vld [vmem:[#allocation5 + $0x8] sm:$0xff]
    %v97 = vld [vmem:[#allocation5 + $0x10] sm:$0xff]
    %v98 = vld [vmem:[#allocation5 + $0x18] sm:$0xff]
    %v99 = vld [vmem:[%s2] sm:$0x1]
    %v101 = vperm.slane %v99, 0
    %111 = vst [vmem:[#allocation1] ss:$4 sm:$0xff] %v87
    %s112 = scalar_lea.vmem [#allocation1], 1
    %113 = vst [vmem:[%s112] ss:$4 sm:$0xff] %v88
    %s114 = scalar_lea.vmem [#allocation1], 2
    %115 = vst [vmem:[%s114] ss:$4 sm:$0xff] %v89
    %s116 = scalar_lea.vmem [#allocation1], 3
    %117 = vst [vmem:[%s116] ss:$4 sm:$0xff] %v90
    %s118 = scalar_lea.vmem [#allocation1], 32
    %119 = vst [vmem:[%s118] ss:$4 sm:$0xff] %v91
    %s120 = scalar_lea.vmem [#allocation1], 33
    %121 = vst [vmem:[%s120] ss:$4 sm:$0xff] %v92
    %s122 = scalar_lea.vmem [#allocation1], 34
    %123 = vst [vmem:[%s122] ss:$4 sm:$0xff] %v93
    %s124 = scalar_lea.vmem [#allocation1], 35
    %125 = vst [vmem:[%s124] ss:$4 sm:$0xff] %v94
    %v126 = vld.sshfl [vmem:[#allocation1] sm:$0xff pattern:$0x73625140]
    %v127 = vld.sshfl [vmem:[#allocation1 + $0x20] sm:$0xff pattern:$0x73625140]
    %vm128 = vcmask 261120
    %v129 = vsel %vm128, %v126, 0
    %v131 = vsel %vm128, %v127, 0
    %133 = vmatpush.msra.mxu0 0.0
    %134 = vmatpush.msra.mxu0 0.0
    %135 = vmatpush.msra.mxu0 0.0
    %136 = vmatpush.msra.mxu0 0.0
    %137 = vmatpush.msra.mxu0 0.0
    %138 = vmatpush.msra.mxu0 0.0
    %139 = vmatpush.msra.mxu0 0.0
    %140 = vmatpush.msra.mxu0 0.0
    %141 = vmatpush.msra.mxu0 0.0
    %142 = vmatpush.msra.mxu0 0.0
    %143 = vmatpush.msra.mxu0 0.0
    %144 = vmatpush.msra.mxu0 0.0
    %145 = vmatpush.msra.mxu0 %v98
    %146 = vmatpush.msra.mxu0 %v97
    %147 = vmatpush.msra.mxu0 %v96
    %148 = vmatpush.msra.mxu0 %v95
    %149 = vmatmul.f32.gmra.mxu0 %v129
    %v150 = vpop.f32.mrf.mxu0
    %v151 = vadd.f32 %v101, %v150
    %152 = vmatmul.f32.gmra.mxu0 %v131
    %v153 = vpop.f32.mrf.mxu0
    %v154 = vadd.f32 %v101, %v153
    %155 = vdwg.mxu0
    %v156 = vlaneseq
    %v157 = vshrl.u32 %v156, 7
    %v158 = vadd.s32 %v157, 8
    %v159 = vlaneseq
    %v160 = vand.u32 %v159, 127
    %v161 = vand.u32 %v157, 1
    %v162 = vand.u32 %v158, 1
    %v163 = vand.u32 %v160, 1
    %vm164 = vcmp.eq.s32.totalorder %v161, %v163
    %vm165 = vcmp.eq.s32.totalorder %v162, %v163
    %v166 = vsel %vm164, 0.0, -1e+30
    %v167 = vsel %vm165, 0.0, -1e+30
    %v168 = vld [vmem:[%s4] sm:$0x1]
    %v170 = vperm.slane %v168, 0
    %v172 = vrot.slane %v170, 2
    %v173 = vrot.slane %v170, 4
    %v174 = vrot.slane %v170, 6
    %v178 = vadd.f32 %v87, %v170
    %v179 = vadd.f32 %v88, %v172
    %v180 = vadd.f32 %v89, %v173
    %v181 = vadd.f32 %v90, %v174
    %v182 = vadd.f32 %v91, %v170
    %v183 = vadd.f32 %v92, %v172
    %v184 = vadd.f32 %v93, %v173
    %v185 = vadd.f32 %v94, %v174
    %188 = vrot.lane.b32.xlu0 %v151, 96
    %v189 = vpop.permute.xlu0 %188
    %190 = vrot.lane.b32.xlu0 %v154, 96
    %v191 = vpop.permute.xlu0 %190
    %vm192 = vcmask 64512
    %v193 = vsel %vm192, %v151, 0
    %v195 = vsel %vm192, %v154, 0
    %v197 = vsel %vm192, %v189, 0
    %v199 = vsel %vm192, %v191, 0
    %201 = vmatpush.xpose.msra.mxu0 0.0
    %202 = vmatpush.xpose.msra.mxu0 0.0
    %203 = vmatpush.xpose.msra.mxu0 0.0
    %204 = vmatpush.xpose.msra.mxu0 0.0
    %205 = vmatpush.xpose.msra.mxu0 0.0
    %206 = vmatpush.xpose.msra.mxu0 0.0
    %207 = vmatpush.xpose.msra.mxu0 0.0
    %208 = vmatpush.xpose.msra.mxu0 0.0
    %209 = vmatpush.xpose.msra.mxu0 0.0
    %210 = vmatpush.xpose.msra.mxu0 0.0
    %211 = vmatpush.xpose.msra.mxu0 0.0
    %212 = vmatpush.xpose.msra.mxu0 0.0
    %213 = vmatpush.xpose.msra.mxu0 0.0
    %214 = vmatpush.xpose.msra.mxu0 0.0
    %215 = vmatpush.xpose.msra.mxu0 %v199
    %216 = vmatpush.xpose.msra.mxu0 %v197
    %217 = vmatmul.f32.gmra.mxu0 %v193
    %v218 = vpop.f32.mrf.mxu0
    %v219 = vadd.f32 %v166, %v218
    %220 = vmatmul.f32.gmra.mxu0 %v195
    %v221 = vpop.f32.mrf.mxu0
    %v222 = vadd.f32 %v167, %v221
    %223 = vdwg.mxu0
    %vm224 = vcmask 130048
    %v225 = vsel %vm224, %v219, -inf
    %226 = vmax.xlane.f32.xlu0 %v225
    %v227 = vpop.xlane.xlu0 %226
    %v228 = vsel %vm224, %v222, -inf
    %229 = vmax.xlane.f32.xlu0 %v228
    %v230 = vpop.xlane.xlu0 %229
    %v231 = vsub.f32 %v219, %v227
    %v232 = vsub.f32 %v222, %v230
    %v233 = vmul.f32 %v231, 1.442695
    %v234 = vpow.pop %v233
    %v235 = vmul.f32 %v232, 1.442695
    %v236 = vpow.pop %v235
    %v237 = vsel %vm224, %v234, 0.0
    %238 = vadd.xlane.f32.xlu0 %v237
    %v239 = vpop.xlane.xlu0 %238
    %v240 = vsel %vm224, %v236, 0.0
    %241 = vadd.xlane.f32.xlu0 %v240
    %v242 = vpop.xlane.xlu0 %241
    %v243 = vrcp.pop %v239
    %v244 = vmul.f32 %v239, %v243
    %v245 = vsub.f32 1.0, %v244
    %v246 = vmul.f32 %v243, %v245
    %v247 = vadd.f32 %v243, %v246
    %vm248 = vweird.f32 %v239
    %vm249 = vweird.f32 %v243
    %vm250 = vmor %vm248, %vm249
    %v251 = vsel %vm250, %v243, %v247
    %v252 = vand.u32 2147483647, %v239
    %vm253 = vcmp.eq.f32.partialorder %v252, 8.507059e+37
    %v254 = vand.u32 %v239, 2147483648
    %v255 = vor.u32 1.1754944e-38, %v254
    %v256 = vsel %vm253, %v255, %v251
    %v257 = vrcp.pop %v242
    %v258 = vmul.f32 %v242, %v257
    %v259 = vsub.f32 1.0, %v258
    %v260 = vmul.f32 %v257, %v259
    %v261 = vadd.f32 %v257, %v260
    %vm262 = vweird.f32 %v242
    %vm263 = vweird.f32 %v257
    %vm264 = vmor %vm262, %vm263
    %v265 = vsel %vm264, %v257, %v261
    %v266 = vand.u32 2147483647, %v242
    %vm267 = vcmp.eq.f32.partialorder %v266, 8.507059e+37
    %v268 = vand.u32 %v242, 2147483648
    %v269 = vor.u32 1.1754944e-38, %v268
    %v270 = vsel %vm267, %v269, %v265
    %v271 = vmul.f32 %v234, %v256
    %v272 = vmul.f32 %v236, %v270
    %273 = vrot.lane.b32.xlu0 %v151, 64
    %v274 = vpop.permute.xlu0 %273
    %275 = vrot.lane.b32.xlu0 %v154, 64
    %v276 = vpop.permute.xlu0 %275
    %v280 = vsel %vm224, %v271, 0
    %v283 = vsel %vm224, %v272, 0
    %285 = vmatpush.msra.mxu0 0.0
    %286 = vmatpush.msra.mxu0 0.0
    %287 = vmatpush.msra.mxu0 0.0
    %288 = vmatpush.msra.mxu0 0.0
    %289 = vmatpush.msra.mxu0 0.0
    %290 = vmatpush.msra.mxu0 0.0
    %291 = vmatpush.msra.mxu0 0.0
    %292 = vmatpush.msra.mxu0 0.0
    %293 = vmatpush.msra.mxu0 0.0
    %294 = vmatpush.msra.mxu0 0.0
    %295 = vmatpush.msra.mxu0 0.0
    %296 = vmatpush.msra.mxu0 0.0
    %297 = vmatpush.msra.mxu0 0.0
    %298 = vmatpush.msra.mxu0 0.0
    %299 = vmatpush.msra.mxu0 %v276
    %300 = vmatpush.msra.mxu0 %v274
    %301 = vmatmul.f32.gmra.mxu0 %v280
    %v302 = vpop.f32.mrf.mxu0
    %v303 = vadd.f32 0.0, %v302
    %304 = vmatmul.f32.gmra.mxu0 %v283
    %v305 = vpop.f32.mrf.mxu0
    %v306 = vadd.f32 0.0, %v305
    %307 = vdwg.mxu0
    %v308 = vld [vmem:[#allocation7] sm:$0xff]
    %v310 = vsel %vm192, %v303, 0
    %v313 = vsel %vm192, %v306, 0
    %315 = vmatpush.msra.mxu0 0.0
    %316 = vmatpush.msra.mxu0 0.0
    %317 = vmatpush.msra.mxu0 0.0
    %318 = vmatpush.msra.mxu0 0.0
    %319 = vmatpush.msra.mxu0 0.0
    %320 = vmatpush.msra.mxu0 0.0
    %321 = vmatpush.msra.mxu0 0.0
    %322 = vmatpush.msra.mxu0 0.0
    %323 = vmatpush.msra.mxu0 0.0
    %324 = vmatpush.msra.mxu0 0.0
    %325 = vmatpush.msra.mxu0 0.0
    %326 = vmatpush.msra.mxu0 0.0
    %327 = vmatpush.msra.mxu0 0.0
    %328 = vmatpush.msra.mxu0 0.0
    %329 = vmatpush.msra.mxu0 0.0
    %330 = vmatpush.msra.mxu0 %v308
    %331 = vmatmul.f32.gmra.mxu0 %v310
    %v332 = vpop.f32.mrf.mxu0
    %v333 = vadd.f32 0.0, %v332
    %334 = vmatmul.f32.gmra.mxu0 %v313
    %v335 = vpop.f32.mrf.mxu0
    %v336 = vadd.f32 0.0, %v335
    %337 = vdwg.mxu0
    %v340 = vrot.slane %v333, 2
    %v341 = vrot.slane %v333, 4
    %v342 = vrot.slane %v333, 6
    %v343 = vrot.slane %v336, 2
    %v344 = vrot.slane %v336, 4
    %v345 = vrot.slane %v336, 6
    %v352 = vadd.f32 %v178, %v333
    %v353 = vadd.f32 %v179, %v340
    %v354 = vadd.f32 %v180, %v341
    %v355 = vadd.f32 %v181, %v342
    %v356 = vadd.f32 %v182, %v336
    %v357 = vadd.f32 %v183, %v343
    %v358 = vadd.f32 %v184, %v344
    %v359 = vadd.f32 %v185, %v345
    %360 = vrot.lane.b32.xlu0 %v151, 120
    %v361 = vpop.permute.xlu0 %360
    %362 = vrot.lane.b32.xlu0 %v154, 120
    %v363 = vpop.permute.xlu0 %362
    %364 = vrot.lane.b32.xlu0 %v151, 88
    %v365 = vpop.permute.xlu0 %364
    %366 = vrot.lane.b32.xlu0 %v154, 88
    %v367 = vpop.permute.xlu0 %366
    %v368 = vsel %vm192, %v361, 0
    %v370 = vsel %vm192, %v363, 0
    %v372 = vsel %vm192, %v365, 0
    %v374 = vsel %vm192, %v367, 0
    %376 = vmatpush.xpose.msra.mxu0 0.0
    %377 = vmatpush.xpose.msra.mxu0 0.0
    %378 = vmatpush.xpose.msra.mxu0 0.0
    %379 = vmatpush.xpose.msra.mxu0 0.0
    %380 = vmatpush.xpose.msra.mxu0 0.0
    %381 = vmatpush.xpose.msra.mxu0 0.0
    %382 = vmatpush.xpose.msra.mxu0 0.0
    %383 = vmatpush.xpose.msra.mxu0 0.0
    %384 = vmatpush.xpose.msra.mxu0 0.0
    %385 = vmatpush.xpose.msra.mxu0 0.0
    %386 = vmatpush.xpose.msra.mxu0 0.0
    %387 = vmatpush.xpose.msra.mxu0 0.0
    %388 = vmatpush.xpose.msra.mxu0 0.0
    %389 = vmatpush.xpose.msra.mxu0 0.0
    %390 = vmatpush.xpose.msra.mxu0 %v374
    %391 = vmatpush.xpose.msra.mxu0 %v372
    %392 = vmatmul.f32.gmra.mxu0 %v368
    %v393 = vpop.f32.mrf.mxu0
    %v394 = vadd.f32 %v166, %v393
    %395 = vmatmul.f32.gmra.mxu0 %v370
    %v396 = vpop.f32.mrf.mxu0
    %v397 = vadd.f32 %v167, %v396
    %398 = vdwg.mxu0
    %v399 = vsel %vm224, %v394, -inf
    %400 = vmax.xlane.f32.xlu0 %v399
    %v401 = vpop.xlane.xlu0 %400
    %v402 = vsel %vm224, %v397, -inf
    %403 = vmax.xlane.f32.xlu0 %v402
    %v404 = vpop.xlane.xlu0 %403
    %v405 = vsub.f32 %v394, %v401
    %v406 = vsub.f32 %v397, %v404
    %v407 = vmul.f32 %v405, 1.442695
    %v408 = vpow.pop %v407
    %v409 = vmul.f32 %v406, 1.442695
    %v410 = vpow.pop %v409
    %v411 = vsel %vm224, %v408, 0.0
    %412 = vadd.xlane.f32.xlu0 %v411
    %v413 = vpop.xlane.xlu0 %412
    %v414 = vsel %vm224, %v410, 0.0
    %415 = vadd.xlane.f32.xlu0 %v414
    %v416 = vpop.xlane.xlu0 %415
    %v417 = vrcp.pop %v413
    %v418 = vmul.f32 %v413, %v417
    %v419 = vsub.f32 1.0, %v418
    %v420 = vmul.f32 %v417, %v419
    %v421 = vadd.f32 %v417, %v420
    %vm422 = vweird.f32 %v413
    %vm423 = vweird.f32 %v417
    %vm424 = vmor %vm422, %vm423
    %v425 = vsel %vm424, %v417, %v421
    %v426 = vand.u32 2147483647, %v413
    %vm427 = vcmp.eq.f32.partialorder %v426, 8.507059e+37
    %v428 = vand.u32 %v413, 2147483648
    %v429 = vor.u32 1.1754944e-38, %v428
    %v430 = vsel %vm427, %v429, %v425
    %v431 = vrcp.pop %v416
    %v432 = vmul.f32 %v416, %v431
    %v433 = vsub.f32 1.0, %v432
    %v434 = vmul.f32 %v431, %v433
    %v435 = vadd.f32 %v431, %v434
    %vm436 = vweird.f32 %v416
    %vm437 = vweird.f32 %v431
    %vm438 = vmor %vm436, %vm437
    %v439 = vsel %vm438, %v431, %v435
    %v440 = vand.u32 2147483647, %v416
    %vm441 = vcmp.eq.f32.partialorder %v440, 8.507059e+37
    %v442 = vand.u32 %v416, 2147483648
    %v443 = vor.u32 1.1754944e-38, %v442
    %v444 = vsel %vm441, %v443, %v439
    %v445 = vmul.f32 %v408, %v430
    %v446 = vmul.f32 %v410, %v444
    %447 = vrot.lane.b32.xlu0 %v151, 56
    %v448 = vpop.permute.xlu0 %447
    %449 = vrot.lane.b32.xlu0 %v154, 56
    %v450 = vpop.permute.xlu0 %449
    %v454 = vsel %vm224, %v445, 0
    %v457 = vsel %vm224, %v446, 0
    %459 = vmatpush.msra.mxu0 0.0
    %460 = vmatpush.msra.mxu0 0.0
    %461 = vmatpush.msra.mxu0 0.0
    %462 = vmatpush.msra.mxu0 0.0
    %463 = vmatpush.msra.mxu0 0.0
    %464 = vmatpush.msra.mxu0 0.0
    %465 = vmatpush.msra.mxu0 0.0
    %466 = vmatpush.msra.mxu0 0.0
    %467 = vmatpush.msra.mxu0 0.0
    %468 = vmatpush.msra.mxu0 0.0
    %469 = vmatpush.msra.mxu0 0.0
    %470 = vmatpush.msra.mxu0 0.0
    %471 = vmatpush.msra.mxu0 0.0
    %472 = vmatpush.msra.mxu0 0.0
    %473 = vmatpush.msra.mxu0 %v450
    %474 = vmatpush.msra.mxu0 %v448
    %475 = vmatmul.f32.gmra.mxu0 %v454
    %v476 = vpop.f32.mrf.mxu0
    %v477 = vadd.f32 0.0, %v476
    %478 = vmatmul.f32.gmra.mxu0 %v457
    %v479 = vpop.f32.mrf.mxu0
    %v480 = vadd.f32 0.0, %v479
    %481 = vdwg.mxu0
    %s482 = scalar_lea.vmem [#allocation7], 8
    %v483 = vld [vmem:[%s482] sm:$0xff]
    %v485 = vsel %vm192, %v477, 0
    %v488 = vsel %vm192, %v480, 0
    %490 = vmatpush.msra.mxu0 0.0
    %491 = vmatpush.msra.mxu0 0.0
    %492 = vmatpush.msra.mxu0 0.0
    %493 = vmatpush.msra.mxu0 0.0
    %494 = vmatpush.msra.mxu0 0.0
    %495 = vmatpush.msra.mxu0 0.0
    %496 = vmatpush.msra.mxu0 0.0
    %497 = vmatpush.msra.mxu0 0.0
    %498 = vmatpush.msra.mxu0 0.0
    %499 = vmatpush.msra.mxu0 0.0
    %500 = vmatpush.msra.mxu0 0.0
    %501 = vmatpush.msra.mxu0 0.0
    %502 = vmatpush.msra.mxu0 0.0
    %503 = vmatpush.msra.mxu0 0.0
    %504 = vmatpush.msra.mxu0 0.0
    %505 = vmatpush.msra.mxu0 %v483
    %506 = vmatmul.f32.gmra.mxu0 %v485
    %v507 = vpop.f32.mrf.mxu0
    %v508 = vadd.f32 0.0, %v507
    %509 = vmatmul.f32.gmra.mxu0 %v488
    %v510 = vpop.f32.mrf.mxu0
    %v511 = vadd.f32 0.0, %v510
    %512 = vdwg.mxu0
    %v515 = vrot.slane %v508, 2
    %v516 = vrot.slane %v508, 4
    %v517 = vrot.slane %v508, 6
    %v518 = vrot.slane %v511, 2
    %v519 = vrot.slane %v511, 4
    %v520 = vrot.slane %v511, 6
    %v527 = vadd.f32 %v352, %v508
    %v528 = vadd.f32 %v353, %v515
    %v529 = vadd.f32 %v354, %v516
    %v530 = vadd.f32 %v355, %v517
    %v531 = vadd.f32 %v356, %v511
    %v532 = vadd.f32 %v357, %v518
    %v533 = vadd.f32 %v358, %v519
    %v534 = vadd.f32 %v359, %v520
    %535 = vrot.lane.b32.xlu0 %v151, 112
    %v536 = vpop.permute.xlu0 %535
    %537 = vrot.lane.b32.xlu0 %v154, 112
    %v538 = vpop.permute.xlu0 %537
    %539 = vrot.lane.b32.xlu0 %v151, 80
    %v540 = vpop.permute.xlu0 %539
    %541 = vrot.lane.b32.xlu0 %v154, 80
    %v542 = vpop.permute.xlu0 %541
    %v543 = vsel %vm192, %v536, 0
    %v545 = vsel %vm192, %v538, 0
    %v547 = vsel %vm192, %v540, 0
    %v549 = vsel %vm192, %v542, 0
    %551 = vmatpush.xpose.msra.mxu0 0.0
    %552 = vmatpush.xpose.msra.mxu0 0.0
    %553 = vmatpush.xpose.msra.mxu0 0.0
    %554 = vmatpush.xpose.msra.mxu0 0.0
    %555 = vmatpush.xpose.msra.mxu0 0.0
    %556 = vmatpush.xpose.msra.mxu0 0.0
    %557 = vmatpush.xpose.msra.mxu0 0.0
    %558 = vmatpush.xpose.msra.mxu0 0.0
    %559 = vmatpush.xpose.msra.mxu0 0.0
    %560 = vmatpush.xpose.msra.mxu0 0.0
    %561 = vmatpush.xpose.msra.mxu0 0.0
    %562 = vmatpush.xpose.msra.mxu0 0.0
    %563 = vmatpush.xpose.msra.mxu0 0.0
    %564 = vmatpush.xpose.msra.mxu0 0.0
    %565 = vmatpush.xpose.msra.mxu0 %v549
    %566 = vmatpush.xpose.msra.mxu0 %v547
    %567 = vmatmul.f32.gmra.mxu0 %v543
    %v568 = vpop.f32.mrf.mxu0
    %v569 = vadd.f32 %v166, %v568
    %570 = vmatmul.f32.gmra.mxu0 %v545
    %v571 = vpop.f32.mrf.mxu0
    %v572 = vadd.f32 %v167, %v571
    %573 = vdwg.mxu0
    %v574 = vsel %vm224, %v569, -inf
    %575 = vmax.xlane.f32.xlu0 %v574
    %v576 = vpop.xlane.xlu0 %575
    %v577 = vsel %vm224, %v572, -inf
    %578 = vmax.xlane.f32.xlu0 %v577
    %v579 = vpop.xlane.xlu0 %578
    %v580 = vsub.f32 %v569, %v576
    %v581 = vsub.f32 %v572, %v579
    %v582 = vmul.f32 %v580, 1.442695
    %v583 = vpow.pop %v582
    %v584 = vmul.f32 %v581, 1.442695
    %v585 = vpow.pop %v584
    %v586 = vsel %vm224, %v583, 0.0
    %587 = vadd.xlane.f32.xlu0 %v586
    %v588 = vpop.xlane.xlu0 %587
    %v589 = vsel %vm224, %v585, 0.0
    %590 = vadd.xlane.f32.xlu0 %v589
    %v591 = vpop.xlane.xlu0 %590
    %v592 = vrcp.pop %v588
    %v593 = vmul.f32 %v588, %v592
    %v594 = vsub.f32 1.0, %v593
    %v595 = vmul.f32 %v592, %v594
    %v596 = vadd.f32 %v592, %v595
    %vm597 = vweird.f32 %v588
    %vm598 = vweird.f32 %v592
    %vm599 = vmor %vm597, %vm598
    %v600 = vsel %vm599, %v592, %v596
    %v601 = vand.u32 2147483647, %v588
    %vm602 = vcmp.eq.f32.partialorder %v601, 8.507059e+37
    %v603 = vand.u32 %v588, 2147483648
    %v604 = vor.u32 1.1754944e-38, %v603
    %v605 = vsel %vm602, %v604, %v600
    %v606 = vrcp.pop %v591
    %v607 = vmul.f32 %v591, %v606
    %v608 = vsub.f32 1.0, %v607
    %v609 = vmul.f32 %v606, %v608
    %v610 = vadd.f32 %v606, %v609
    %vm611 = vweird.f32 %v591
    %vm612 = vweird.f32 %v606
    %vm613 = vmor %vm611, %vm612
    %v614 = vsel %vm613, %v606, %v610
    %v615 = vand.u32 2147483647, %v591
    %vm616 = vcmp.eq.f32.partialorder %v615, 8.507059e+37
    %v617 = vand.u32 %v591, 2147483648
    %v618 = vor.u32 1.1754944e-38, %v617
    %v619 = vsel %vm616, %v618, %v614
    %v620 = vmul.f32 %v583, %v605
    %v621 = vmul.f32 %v585, %v619
    %622 = vrot.lane.b32.xlu0 %v151, 48
    %v623 = vpop.permute.xlu0 %622
    %624 = vrot.lane.b32.xlu0 %v154, 48
    %v625 = vpop.permute.xlu0 %624
    %v629 = vsel %vm224, %v620, 0
    %v632 = vsel %vm224, %v621, 0
    %634 = vmatpush.msra.mxu0 0.0
    %635 = vmatpush.msra.mxu0 0.0
    %636 = vmatpush.msra.mxu0 0.0
    %637 = vmatpush.msra.mxu0 0.0
    %638 = vmatpush.msra.mxu0 0.0
    %639 = vmatpush.msra.mxu0 0.0
    %640 = vmatpush.msra.mxu0 0.0
    %641 = vmatpush.msra.mxu0 0.0
    %642 = vmatpush.msra.mxu0 0.0
    %643 = vmatpush.msra.mxu0 0.0
    %644 = vmatpush.msra.mxu0 0.0
    %645 = vmatpush.msra.mxu0 0.0
    %646 = vmatpush.msra.mxu0 0.0
    %647 = vmatpush.msra.mxu0 0.0
    %648 = vmatpush.msra.mxu0 %v625
    %649 = vmatpush.msra.mxu0 %v623
    %650 = vmatmul.f32.gmra.mxu0 %v629
    %v651 = vpop.f32.mrf.mxu0
    %v652 = vadd.f32 0.0, %v651
    %653 = vmatmul.f32.gmra.mxu0 %v632
    %v654 = vpop.f32.mrf.mxu0
    %v655 = vadd.f32 0.0, %v654
    %656 = vdwg.mxu0
    %s657 = scalar_lea.vmem [#allocation7], 16
    %v658 = vld [vmem:[%s657] sm:$0xff]
    %v660 = vsel %vm192, %v652, 0
    %v663 = vsel %vm192, %v655, 0
    %665 = vmatpush.msra.mxu0 0.0
    %666 = vmatpush.msra.mxu0 0.0
    %667 = vmatpush.msra.mxu0 0.0
    %668 = vmatpush.msra.mxu0 0.0
    %669 = vmatpush.msra.mxu0 0.0
    %670 = vmatpush.msra.mxu0 0.0
    %671 = vmatpush.msra.mxu0 0.0
    %672 = vmatpush.msra.mxu0 0.0
    %673 = vmatpush.msra.mxu0 0.0
    %674 = vmatpush.msra.mxu0 0.0
    %675 = vmatpush.msra.mxu0 0.0
    %676 = vmatpush.msra.mxu0 0.0
    %677 = vmatpush.msra.mxu0 0.0
    %678 = vmatpush.msra.mxu0 0.0
    %679 = vmatpush.msra.mxu0 0.0
    %680 = vmatpush.msra.mxu0 %v658
    %681 = vmatmul.f32.gmra.mxu0 %v660
    %v682 = vpop.f32.mrf.mxu0
    %v683 = vadd.f32 0.0, %v682
    %684 = vmatmul.f32.gmra.mxu0 %v663
    %v685 = vpop.f32.mrf.mxu0
    %v686 = vadd.f32 0.0, %v685
    %687 = vdwg.mxu0
    %v690 = vrot.slane %v683, 2
    %v691 = vrot.slane %v683, 4
    %v692 = vrot.slane %v683, 6
    %v693 = vrot.slane %v686, 2
    %v694 = vrot.slane %v686, 4
    %v695 = vrot.slane %v686, 6
    %v702 = vadd.f32 %v527, %v683
    %v703 = vadd.f32 %v528, %v690
    %v704 = vadd.f32 %v529, %v691
    %v705 = vadd.f32 %v530, %v692
    %v706 = vadd.f32 %v531, %v686
    %v707 = vadd.f32 %v532, %v693
    %v708 = vadd.f32 %v533, %v694
    %v709 = vadd.f32 %v534, %v695
    %710 = vrot.lane.b32.xlu0 %v151, 104
    %v711 = vpop.permute.xlu0 %710
    %712 = vrot.lane.b32.xlu0 %v154, 104
    %v713 = vpop.permute.xlu0 %712
    %714 = vrot.lane.b32.xlu0 %v151, 72
    %v715 = vpop.permute.xlu0 %714
    %716 = vrot.lane.b32.xlu0 %v154, 72
    %v717 = vpop.permute.xlu0 %716
    %v718 = vsel %vm192, %v711, 0
    %v720 = vsel %vm192, %v713, 0
    %v722 = vsel %vm192, %v715, 0
    %v724 = vsel %vm192, %v717, 0
    %726 = vmatpush.xpose.msra.mxu0 0.0
    %727 = vmatpush.xpose.msra.mxu0 0.0
    %728 = vmatpush.xpose.msra.mxu0 0.0
    %729 = vmatpush.xpose.msra.mxu0 0.0
    %730 = vmatpush.xpose.msra.mxu0 0.0
    %731 = vmatpush.xpose.msra.mxu0 0.0
    %732 = vmatpush.xpose.msra.mxu0 0.0
    %733 = vmatpush.xpose.msra.mxu0 0.0
    %734 = vmatpush.xpose.msra.mxu0 0.0
    %735 = vmatpush.xpose.msra.mxu0 0.0
    %736 = vmatpush.xpose.msra.mxu0 0.0
    %737 = vmatpush.xpose.msra.mxu0 0.0
    %738 = vmatpush.xpose.msra.mxu0 0.0
    %739 = vmatpush.xpose.msra.mxu0 0.0
    %740 = vmatpush.xpose.msra.mxu0 %v724
    %741 = vmatpush.xpose.msra.mxu0 %v722
    %742 = vmatmul.f32.gmra.mxu0 %v718
    %v743 = vpop.f32.mrf.mxu0
    %v744 = vadd.f32 %v166, %v743
    %745 = vmatmul.f32.gmra.mxu0 %v720
    %v746 = vpop.f32.mrf.mxu0
    %v747 = vadd.f32 %v167, %v746
    %748 = vdwg.mxu0
    %v749 = vsel %vm224, %v744, -inf
    %750 = vmax.xlane.f32.xlu0 %v749
    %v751 = vpop.xlane.xlu0 %750
    %v752 = vsel %vm224, %v747, -inf
    %753 = vmax.xlane.f32.xlu0 %v752
    %v754 = vpop.xlane.xlu0 %753
    %v755 = vsub.f32 %v744, %v751
    %v756 = vsub.f32 %v747, %v754
    %v757 = vmul.f32 %v755, 1.442695
    %v758 = vpow.pop %v757
    %v759 = vmul.f32 %v756, 1.442695
    %v760 = vpow.pop %v759
    %v761 = vsel %vm224, %v758, 0.0
    %762 = vadd.xlane.f32.xlu0 %v761
    %v763 = vpop.xlane.xlu0 %762
    %v764 = vsel %vm224, %v760, 0.0
    %765 = vadd.xlane.f32.xlu0 %v764
    %v766 = vpop.xlane.xlu0 %765
    %v767 = vrcp.pop %v763
    %v768 = vmul.f32 %v763, %v767
    %v769 = vsub.f32 1.0, %v768
    %v770 = vmul.f32 %v767, %v769
    %v771 = vadd.f32 %v767, %v770
    %vm772 = vweird.f32 %v763
    %vm773 = vweird.f32 %v767
    %vm774 = vmor %vm772, %vm773
    %v775 = vsel %vm774, %v767, %v771
    %v776 = vand.u32 2147483647, %v763
    %vm777 = vcmp.eq.f32.partialorder %v776, 8.507059e+37
    %v778 = vand.u32 %v763, 2147483648
    %v779 = vor.u32 1.1754944e-38, %v778
    %v780 = vsel %vm777, %v779, %v775
    %v781 = vrcp.pop %v766
    %v782 = vmul.f32 %v766, %v781
    %v783 = vsub.f32 1.0, %v782
    %v784 = vmul.f32 %v781, %v783
    %v785 = vadd.f32 %v781, %v784
    %vm786 = vweird.f32 %v766
    %vm787 = vweird.f32 %v781
    %vm788 = vmor %vm786, %vm787
    %v789 = vsel %vm788, %v781, %v785
    %v790 = vand.u32 2147483647, %v766
    %vm791 = vcmp.eq.f32.partialorder %v790, 8.507059e+37
    %v792 = vand.u32 %v766, 2147483648
    %v793 = vor.u32 1.1754944e-38, %v792
    %v794 = vsel %vm791, %v793, %v789
    %v795 = vmul.f32 %v758, %v780
    %v796 = vmul.f32 %v760, %v794
    %797 = vrot.lane.b32.xlu0 %v151, 40
    %v798 = vpop.permute.xlu0 %797
    %799 = vrot.lane.b32.xlu0 %v154, 40
    %v800 = vpop.permute.xlu0 %799
    %v804 = vsel %vm224, %v795, 0
    %v807 = vsel %vm224, %v796, 0
    %809 = vmatpush.msra.mxu0 0.0
    %810 = vmatpush.msra.mxu0 0.0
    %811 = vmatpush.msra.mxu0 0.0
    %812 = vmatpush.msra.mxu0 0.0
    %813 = vmatpush.msra.mxu0 0.0
    %814 = vmatpush.msra.mxu0 0.0
    %815 = vmatpush.msra.mxu0 0.0
    %816 = vmatpush.msra.mxu0 0.0
    %817 = vmatpush.msra.mxu0 0.0
    %818 = vmatpush.msra.mxu0 0.0
    %819 = vmatpush.msra.mxu0 0.0
    %820 = vmatpush.msra.mxu0 0.0
    %821 = vmatpush.msra.mxu0 0.0
    %822 = vmatpush.msra.mxu0 0.0
    %823 = vmatpush.msra.mxu0 %v800
    %824 = vmatpush.msra.mxu0 %v798
    %825 = vmatmul.f32.gmra.mxu0 %v804
    %v826 = vpop.f32.mrf.mxu0
    %v827 = vadd.f32 0.0, %v826
    %828 = vmatmul.f32.gmra.mxu0 %v807
    %v829 = vpop.f32.mrf.mxu0
    %v830 = vadd.f32 0.0, %v829
    %831 = vdwg.mxu0
    %s832 = scalar_lea.vmem [#allocation7], 24
    %v833 = vld [vmem:[%s832] sm:$0xff]
    %v835 = vsel %vm192, %v827, 0
    %v838 = vsel %vm192, %v830, 0
    %840 = vmatpush.msra.mxu0 0.0
    %841 = vmatpush.msra.mxu0 0.0
    %842 = vmatpush.msra.mxu0 0.0
    %843 = vmatpush.msra.mxu0 0.0
    %844 = vmatpush.msra.mxu0 0.0
    %845 = vmatpush.msra.mxu0 0.0
    %846 = vmatpush.msra.mxu0 0.0
    %847 = vmatpush.msra.mxu0 0.0
    %848 = vmatpush.msra.mxu0 0.0
    %849 = vmatpush.msra.mxu0 0.0
    %850 = vmatpush.msra.mxu0 0.0
    %851 = vmatpush.msra.mxu0 0.0
    %852 = vmatpush.msra.mxu0 0.0
    %853 = vmatpush.msra.mxu0 0.0
    %854 = vmatpush.msra.mxu0 0.0
    %855 = vmatpush.msra.mxu0 %v833
    %856 = vmatmul.f32.gmra.mxu0 %v835
    %v857 = vpop.f32.mrf.mxu0
    %v858 = vadd.f32 0.0, %v857
    %859 = vmatmul.f32.gmra.mxu0 %v838
    %v860 = vpop.f32.mrf.mxu0
    %v861 = vadd.f32 0.0, %v860
    %862 = vdwg.mxu0
    %v865 = vrot.slane %v858, 2
    %v866 = vrot.slane %v858, 4
    %v867 = vrot.slane %v858, 6
    %v868 = vrot.slane %v861, 2
    %v869 = vrot.slane %v861, 4
    %v870 = vrot.slane %v861, 6
    %v877 = vadd.f32 %v702, %v858
    %v878 = vadd.f32 %v703, %v865
    %v879 = vadd.f32 %v704, %v866
    %v880 = vadd.f32 %v705, %v867
    %v881 = vadd.f32 %v706, %v861
    %v882 = vadd.f32 %v707, %v868
    %v883 = vadd.f32 %v708, %v869
    %v884 = vadd.f32 %v709, %v870
    %v885 = vld [vmem:[#allocation8] sm:$0xff]
    %v886 = vld [vmem:[#allocation8 + $0x8] sm:$0xff]
    %v887 = vld [vmem:[#allocation8 + $0x10] sm:$0xff]
    %v888 = vld [vmem:[#allocation8 + $0x18] sm:$0xff]
    %897 = vst [vmem:[#allocation1] ss:$4 sm:$0xff] %v877
    %s898 = scalar_lea.vmem [#allocation1], 1
    %899 = vst [vmem:[%s898] ss:$4 sm:$0xff] %v878
    %s900 = scalar_lea.vmem [#allocation1], 2
    %901 = vst [vmem:[%s900] ss:$4 sm:$0xff] %v879
    %s902 = scalar_lea.vmem [#allocation1], 3
    %903 = vst [vmem:[%s902] ss:$4 sm:$0xff] %v880
    %s904 = scalar_lea.vmem [#allocation1], 32
    %905 = vst [vmem:[%s904] ss:$4 sm:$0xff] %v881
    %s906 = scalar_lea.vmem [#allocation1], 33
    %907 = vst [vmem:[%s906] ss:$4 sm:$0xff] %v882
    %s908 = scalar_lea.vmem [#allocation1], 34
    %909 = vst [vmem:[%s908] ss:$4 sm:$0xff] %v883
    %s910 = scalar_lea.vmem [#allocation1], 35
    %911 = vst [vmem:[%s910] ss:$4 sm:$0xff] %v884
    %v912 = vld.sshfl [vmem:[#allocation1] sm:$0xff pattern:$0x73625140]
    %v913 = vld.sshfl [vmem:[#allocation1 + $0x20] sm:$0xff pattern:$0x73625140]
    %914 = vst [vmem:[#allocation1] ss:$4 sm:$0xff] %v877
    %s915 = scalar_lea.vmem [#allocation1], 1
    %916 = vst [vmem:[%s915] ss:$4 sm:$0xff] %v878
    %s917 = scalar_lea.vmem [#allocation1], 2
    %918 = vst [vmem:[%s917] ss:$4 sm:$0xff] %v879
    %s919 = scalar_lea.vmem [#allocation1], 3
    %920 = vst [vmem:[%s919] ss:$4 sm:$0xff] %v880
    %s921 = scalar_lea.vmem [#allocation1], 32
    %922 = vst [vmem:[%s921] ss:$4 sm:$0xff] %v881
    %s923 = scalar_lea.vmem [#allocation1], 33
    %924 = vst [vmem:[%s923] ss:$4 sm:$0xff] %v882
    %s925 = scalar_lea.vmem [#allocation1], 34
    %926 = vst [vmem:[%s925] ss:$4 sm:$0xff] %v883
    %s927 = scalar_lea.vmem [#allocation1], 35
    %928 = vst [vmem:[%s927] ss:$4 sm:$0xff] %v884
    %v929 = vld.sshfl [vmem:[#allocation1] sm:$0xff pattern:$0x73625140]
    %v930 = vld.sshfl [vmem:[#allocation1 + $0x20] sm:$0xff pattern:$0x73625140]
    %v933 = vsel %vm128, %v912, 0
    %v935 = vsel %vm128, %v913, 0
    %937 = vmatpush.msra.mxu0 0.0
    %938 = vmatpush.msra.mxu0 0.0
    %939 = vmatpush.msra.mxu0 0.0
    %940 = vmatpush.msra.mxu0 0.0
    %941 = vmatpush.msra.mxu0 0.0
    %942 = vmatpush.msra.mxu0 0.0
    %943 = vmatpush.msra.mxu0 0.0
    %944 = vmatpush.msra.mxu0 0.0
    %945 = vmatpush.msra.mxu0 0.0
    %946 = vmatpush.msra.mxu0 0.0
    %947 = vmatpush.msra.mxu0 0.0
    %948 = vmatpush.msra.mxu0 0.0
    %949 = vmatpush.msra.mxu0 %v888
    %950 = vmatpush.msra.mxu0 %v887
    %951 = vmatpush.msra.mxu0 %v886
    %952 = vmatpush.msra.mxu0 %v885
    %953 = vmatmul.f32.gmra.mxu0 %v933
    %v954 = vpop.f32.mrf.mxu0
    %v955 = vadd.f32 %v929, %v954
    %956 = vmatmul.f32.gmra.mxu0 %v935
    %v957 = vpop.f32.mrf.mxu0
    %v958 = vadd.f32 %v930, %v957
    %959 = vdwg.mxu0
    %v962 = vrot.slane %v955, 2
    %v963 = vrot.slane %v955, 4
    %v964 = vrot.slane %v955, 6
    %v965 = vrot.slane %v958, 2
    %v966 = vrot.slane %v958, 4
    %v967 = vrot.slane %v958, 6
    %vm974 = vcmask 254976
    %975 = vst.msk [vmem:[#allocation10] sm:$0x3] %vm974, %v955
    %976 = vst.msk [vmem:[#allocation10 + $0x2] sm:$0x3] %vm974, %v962
    %977 = vst.msk [vmem:[#allocation10 + $0x4] sm:$0x3] %vm974, %v963
    %978 = vst.msk [vmem:[#allocation10 + $0x6] sm:$0x3] %vm974, %v964
    %979 = vst.msk [vmem:[#allocation10 + $0x8] sm:$0x3] %vm974, %v958
    %980 = vst.msk [vmem:[#allocation10 + $0xa] sm:$0x3] %vm974, %v965
    %981 = vst.msk [vmem:[#allocation10 + $0xc] sm:$0x3] %vm974, %v966
    %982 = vst.msk [vmem:[#allocation10 + $0xe] sm:$0x3] %vm974, %v967
    // Predicated region
    $region42: #{tpu_custom_call.1} parent=1 // pred_check
      _
    $region43: #{tpu_custom_call.1} parent=1 // pred_check_branch
      %984 = sbr.rel (0) target = $region45
    $region44: #{tpu_custom_call.1} parent=1 // pred_region
      %986 = vsyncadd [#allocation4], 0
      %s987 = sshll.u32 [#allocation10], 4
      %s988 = int_to_ptr.vmem [resolvable:$true] %s987
      %s989 = sshll.u32 %s6, 4
      %s990 = int_to_ptr.hbm [resolvable:$true] %s989
      %995 = dma.vmem_to_hbm [thread:$0]  %s988, 256, %s990, [#allocation4], 32, 32, 2
    $region45: #{tpu_custom_call.1} parent=1 // pred_fallthru
      _
    // Predicated region
    $region46: #{tpu_custom_call.1} parent=1 // pred_check
      _
    $region47: #{tpu_custom_call.1} parent=1 // pred_check_branch
      %997 = sbr.rel (0) target = $region49
    $region48: #{tpu_custom_call.1} parent=1 // pred_region
      %999 = dma.done [#allocation4], 256
    $region49: #{tpu_custom_call.1} parent=1 // pred_fallthru
      _
    %1000 = vsyncpa [#allocation3], 1
    %1001 = vsyncpa [#allocation6], 1
    %1002 = vsyncpa [#allocation9], 1
    %1003 = vsyncpa [#allocation4], 1

</llo_original>
